<compile_context>
chip_gen: v6e
topology: v6e:2x2x1
jax: 0.10.0
libtpu: 0.0.40
codegen_flags: <defaults>
</compile_context>

<pallas_src>
import jax
import jax.numpy as jnp
from jax.experimental import pallas as pl
from jax.experimental.pallas import tpu as pltpu

LN_EPS = 1e-5  # torch.nn.LayerNorm default


# ---------------------------------------------------------------------------
# Generation-aware tiling heuristics
# ---------------------------------------------------------------------------
def _chip_info():
    """Tiling knobs per TPU generation (v7x: 2 TCs, 64 MiB VMEM; else 1 TC, 128 MiB)."""
    kind = ""
    try:
        kind = jax.devices()[0].device_kind.lower()
    except Exception:
        pass
    if "v7" in kind:
        return {"cores": 2, "row_target": 1024,
                "vmem_budget": 40 << 20, "vmem_cap": 44 << 20}
    # v5e / v6e (and default): single TensorCore, 128 MiB physical VMEM.
    return {"cores": 1, "row_target": 512,
            "vmem_budget": 64 << 20, "vmem_cap": 96 << 20}


def _pick_tile_rows(n_rows, hidden, dtype, bytes_per_row, fixed_bytes, info):
    """Largest dtype-aligned row tile fitting the VMEM budget.

    On v5e/v6e we never shrink for block count (single TC: extra grid steps
    only add ~0.35 us each).  On v7x we only require >= 2 blocks so both
    TensorCores get work.
    """
    isz = jnp.dtype(dtype).itemsize
    align = {4: 8, 2: 16, 1: 32}.get(isz, 8)
    if n_rows <= align:
        return n_rows  # single block whose row dim equals the full array dim
    target = info["row_target"] if hidden <= 2048 else 512
    tile = min(target, max(align, (n_rows // align) * align))
    budget = max(info["vmem_budget"] - fixed_bytes, 1 << 20)

    def ok(t):
        fits = t * bytes_per_row <= budget
        blocks_ok = info["cores"] <= 1 or pl.cdiv(n_rows, t) >= info["cores"]
        return fits and blocks_ok

    while tile > align and not ok(tile):
        tile = max(align, ((tile // 2) // align) * align)
    return tile


def _pick_tile_k(hidden):
    """MXU-friendly contraction block (>=256 when possible); must divide `hidden`
    exactly so no out-of-bounds garbage enters the accumulation."""
    if hidden <= 512:
        return hidden
    for cand in (512, 256, 128):
        if hidden % cand == 0:
            return cand
    return hidden


# ---------------------------------------------------------------------------
# Kernels
# ---------------------------------------------------------------------------
def _fused_linear_ln_kernel(a_ref, x_ref, w_ref, params_ref, o_ref, acc_ref):
    """One (row_block, k_block) step of  LayerNorm(x + a * (x @ W + b)).

    a_ref:      SMEM scalar-prefetch (1,), f32 residual scale
    x_ref:      VMEM (tile_rows, hidden) — resident across the k axis
    w_ref:      VMEM (tile_k, hidden)    — streamed along the contraction
    params_ref: VMEM (3, hidden) f32     — [bias; gamma; beta], resident
    o_ref:      VMEM (tile_rows, hidden) output tile
    acc_ref:    VMEM (tile_rows, hidden) f32 accumulator scratch
    """
    k = pl.program_id(1)
    tile_k = w_ref.shape[0]

    @pl.when(k == 0)
    def _init():
        acc_ref[...] = jnp.zeros_like(acc_ref)

    start = k * tile_k
    if tile_k % 128 == 0:
        start = pl.multiple_of(start, 128)
    x_k = x_ref[:, pl.ds(start, tile_k)].astype(jnp.float32)
    acc_ref[...] += jnp.dot(x_k, w_ref[...].astype(jnp.float32),
                            preferred_element_type=jnp.float32)

    @pl.when(k == pl.num_programs(1) - 1)
    def _finalize():
        a = a_ref[0]
        bias = params_ref[0:1, :]
        gamma = params_ref[1:2, :]
        beta = params_ref[2:3, :]
        y = x_ref[...].astype(jnp.float32) + a * (acc_ref[...] + bias)
        mean = jnp.mean(y, axis=-1, keepdims=True)
        cent = y - mean
        var = jnp.mean(cent * cent, axis=-1, keepdims=True)
        o_ref[...] = (cent * jax.lax.rsqrt(var + LN_EPS) * gamma
                      + beta).astype(o_ref.dtype)


def _residual_ln_kernel(a_ref, x_ref, s_ref, params_ref, o_ref):
    """Generic path:  LayerNorm(x + a * s)  for a precomputed sublayer output s."""
    a = a_ref[0]
    y = x_ref[...].astype(jnp.float32) + a * s_ref[...].astype(jnp.float32)
    mean = jnp.mean(y, axis=-1, keepdims=True)
    cent = y - mean
    var = jnp.mean(cent * cent, axis=-1, keepdims=True)
    gamma = params_ref[0:1, :]
    beta = params_ref[1:2, :]
    o_ref[...] = (cent * jax.lax.rsqrt(var + LN_EPS) * gamma
                  + beta).astype(o_ref.dtype)


# ---------------------------------------------------------------------------
# Wrappers
# ---------------------------------------------------------------------------
def sublayer_connection_linear(x, w, b, a, gamma, beta, *,
                               enable_res_parameter=True,
                               tile_rows=None, tile_k=None):
    """y = LayerNorm(x + a * (x @ w + b)) with the Linear sublayer fused in-kernel."""
    orig_shape = x.shape
    hidden = orig_shape[-1]
    assert w.shape == (hidden, hidden), "sublayer must preserve the hidden size"
    x2 = x.reshape(-1, hidden)
    n_rows = x2.shape[0]
    isz = jnp.dtype(x.dtype).itemsize
    w_isz = jnp.dtype(w.dtype).itemsize
    info = _chip_info()

    if tile_k is None:
        tile_k = _pick_tile_k(hidden)
    assert hidden % tile_k == 0, "tile_k must divide hidden"
    n_k = hidden // tile_k

    if tile_rows is None:
        # x + out double-buffered in input dtype, plus f32 accumulator and
        # upcast intermediates; W and params are fixed-size operands.
        bytes_per_row = 2 * 2 * hidden * isz + 3 * hidden * 4
        fixed = 2 * tile_k * hidden * w_isz + 2 * 3 * hidden * 4
        tile_rows = _pick_tile_rows(n_rows, hidden, x.dtype,
                                    bytes_per_row, fixed, info)
    n_blocks = pl.cdiv(n_rows, tile_rows)  # last block may be partial (masked store)

    # Residual scale: a when enabled, 1.0 otherwise (x + 1.0 * s in eval mode).
    a_arr = (jnp.asarray(a, dtype=jnp.float32).reshape(1)
             if enable_res_parameter else jnp.ones((1,), jnp.float32))
    # bias / gamma / beta merged into one resident f32 operand (one DMA stream).
    params = jnp.stack([b.astype(jnp.float32).reshape(hidden),
                        gamma.astype(jnp.float32).reshape(hidden),
                        beta.astype(jnp.float32).reshape(hidden)], axis=0)

    vmem_needed = (2 * 2 * tile_rows * hidden * isz
                   + 2 * tile_k * hidden * w_isz
                   + 3 * tile_rows * hidden * 4
                   + 2 * 3 * hidden * 4)
    vmem_limit = int(min(max(vmem_needed + vmem_needed // 2, 8 << 20),
                         info["vmem_cap"]))

    out = pl.pallas_call(
        _fused_linear_ln_kernel,
        out_shape=jax.ShapeDtypeStruct((n_rows, hidden), x.dtype),
        grid_spec=pltpu.PrefetchScalarGridSpec(
            num_scalar_prefetch=1,                 # `a` lands in SMEM up front
            grid=(n_blocks, n_k),                  # rows parallel, K arbitrary (last)
            in_specs=[
                # x: full row block, resident across k (read from HBM once).
                pl.BlockSpec((tile_rows, hidden), lambda i, k, a_ref: (i, 0)),
                # W: streamed (tile_k, hidden) blocks along the contraction.
                pl.BlockSpec((tile_k, hidden), lambda i, k, a_ref: (k, 0)),
                # [bias; gamma; beta]: resident.
                pl.BlockSpec((3, hidden), lambda i, k, a_ref: (0, 0)),
            ],
            out_specs=pl.BlockSpec((tile_rows, hidden),
                                   lambda i, k, a_ref: (i, 0)),
            scratch_shapes=[pltpu.VMEM((tile_rows, hidden), jnp.float32)],
        ),
        compiler_params=pltpu.CompilerParams(
            dimension_semantics=("parallel", "arbitrary"),
            vmem_limit_bytes=vmem_limit,
        ),
    )(a_arr, x2, w, params)

    return out.reshape(orig_shape)


def sublayer_connection(x, sublayer_out, a, gamma, beta, *,
                        enable_res_parameter=True, tile_rows=None):
    """y = LayerNorm(x + a * sublayer_out) for an arbitrary (precomputed) sublayer."""
    # TODO(synk): only Linear sublayers are fused (sublayer_connection_linear);
    # other callables run in plain JAX and feed this residual+LN kernel.
    orig_shape = x.shape
    hidden = orig_shape[-1]
    x2 = x.reshape(-1, hidden)
    s2 = sublayer_out.reshape(-1, hidden)
    n_rows = x2.shape[0]
    isz = jnp.dtype(x.dtype).itemsize
    info = _chip_info()

    if tile_rows is None:
        bytes_per_row = 3 * 2 * hidden * isz + 3 * hidden * 4
        fixed = 2 * 2 * hidden * 4
        tile_rows = _pick_tile_rows(n_rows, hidden, x.dtype,
                                    bytes_per_row, fixed, info)
    n_blocks = pl.cdiv(n_rows, tile_rows)  # last block may be partial (masked store)

    a_arr = (jnp.asarray(a, dtype=jnp.float32).reshape(1)
             if enable_res_parameter else jnp.ones((1,), jnp.float32))
    params = jnp.stack([gamma.astype(jnp.float32).reshape(hidden),
                        beta.astype(jnp.float32).reshape(hidden)], axis=0)

    vmem_needed = (3 * 2 * tile_rows * hidden * isz
                   + 3 * tile_rows * hidden * 4
                   + 2 * 2 * hidden * 4)
    vmem_limit = int(min(max(vmem_needed + vmem_needed // 2, 8 << 20),
                         info["vmem_cap"]))

    out = pl.pallas_call(
        _residual_ln_kernel,
        out_shape=jax.ShapeDtypeStruct((n_rows, hidden), x.dtype),
        grid_spec=pltpu.PrefetchScalarGridSpec(
            num_scalar_prefetch=1,
            grid=(n_blocks,),
            in_specs=[
                pl.BlockSpec((tile_rows, hidden), lambda i, a_ref: (i, 0)),  # x
                pl.BlockSpec((tile_rows, hidden), lambda i, a_ref: (i, 0)),  # s
                pl.BlockSpec((2, hidden), lambda i, a_ref: (0, 0)),  # gamma;beta
            ],
            out_specs=pl.BlockSpec((tile_rows, hidden), lambda i, a_ref: (i, 0)),
        ),
        compiler_params=pltpu.CompilerParams(
            dimension_semantics=("parallel",),
            vmem_limit_bytes=vmem_limit,
        ),
    )(a_arr, x2, s2, params)

    return out.reshape(orig_shape)


# ---------------------------------------------------------------------------
# Demo / correctness check
# ---------------------------------------------------------------------------
if __name__ == "__main__":
    B, S, H = 2, 8, 128
    key = jax.random.PRNGKey(0)
    kx, kw, kb, kx2 = jax.random.split(key, 4)

    x = jax.random.normal(kx, (B, S, H), dtype=jnp.float32)
    gamma = jnp.ones((H,), jnp.float32)   # torch LayerNorm default weight
    beta = jnp.zeros((H,), jnp.float32)   # torch LayerNorm default bias
    a = jnp.float32(1e-8)                 # module's residual-scale init

    # Linear(H, H) sublayer parameters (deterministic synthetic init).
    w = jax.random.normal(kw, (H, H), dtype=jnp.float32) / jnp.sqrt(H)
    b = jax.random.normal(kb, (H,), dtype=jnp.float32) * 0.01

    def ln_ref(y):
        mu = jnp.mean(y, axis=-1, keepdims=True)
        var = jnp.mean((y - mu) ** 2, axis=-1, keepdims=True)
        return (y - mu) / jnp.sqrt(var + LN_EPS) * gamma + beta

    s_ref = jnp.einsum("bsh,hk->bsk", x, w,
                       precision=jax.lax.Precision.HIGHEST) + b

    # 1) Fused path: Linear sublayer matmul + residual + LayerNorm in one kernel.
    y = jax.block_until_ready(
        sublayer_connection_linear(x, w, b, a, gamma, beta,
                                   enable_res_parameter=True))
    ref = ln_ref(x + a * s_ref)
    assert y.shape == x.shape
    assert jnp.allclose(y, ref, atol=1e-5, rtol=1e-5), "fused path mismatch"

    # 2) Generic path (arbitrary sublayer callable), ragged rows + non-dividing
    #    tile to exercise the partial-boundary-block handling (no pad/slice).
    B2, S2 = 3, 7
    x_r = jax.random.normal(kx2, (B2, S2, H), dtype=jnp.float32)
    s_r = jax.nn.gelu(jnp.einsum("bsh,hk->bsk", x_r, w,
                                 precision=jax.lax.Precision.HIGHEST) + b)
    y_r = jax.block_until_ready(
        sublayer_connection(x_r, s_r, a, gamma, beta, tile_rows=16))
    ref_r = ln_ref(x_r + a * s_r)
    assert jnp.allclose(y_r, ref_r, atol=1e-5, rtol=1e-5), "generic path mismatch"

    # 3) enable_res_parameter=False branch: LayerNorm(x + sublayer(x)).
    #    Looser tolerance: the in-kernel MXU matmul and the XLA reference matmul
    #    may use slightly different f32 accumulation strategies.
    y_n = jax.block_until_ready(
        sublayer_connection_linear(x, w, b, a, gamma, beta,
                                   enable_res_parameter=False))
    ref_n = ln_ref(x + s_ref)
    assert jnp.allclose(y_n, ref_n, atol=2e-2), "no-res-param branch mismatch"

    print("KERNEL_OK")
</pallas_src>

<mosaic_0001>
module attributes {stable_mosaic.version = 11 : i64} {
  func.func @_fused_linear_ln_kernel(%arg0: i32, %arg1: i32, %arg2: memref<1xf32, #tpu.memory_space<smem>>, %arg3: memref<16x128xf32, #tpu.memory_space<vmem>>, %arg4: memref<128x128xf32, #tpu.memory_space<vmem>>, %arg5: memref<3x128xf32, #tpu.memory_space<vmem>>, %arg6: memref<16x128xf32, #tpu.memory_space<vmem>>, %arg7: memref<16x128xf32, #tpu.memory_space<vmem>>) attributes {dimension_semantics = [#tpu.dimension_semantics<parallel>, #tpu.dimension_semantics<arbitrary>], iteration_bounds = array<i64: 1, 1>, scalar_prefetch = 1 : i64, scratch_operands = 1 : i64, tpu.core_type = #tpu.core_type<tc>, window_params = [{transform_indices = @transform_0, window_bounds = array<i64: 16, 128>}, {transform_indices = @transform_1, window_bounds = array<i64: 128, 128>}, {pipeline_mode = #tpu.pipeline_mode<synchronous>, transform_indices = @transform_2, window_bounds = array<i64: 3, 128>}, {transform_indices = @transform_3, window_bounds = array<i64: 16, 128>}]} {
    %c0_i32 = arith.constant 0 : i32
    %0 = arith.cmpi eq, %arg1, %c0_i32 : i32
    %1 = arith.extui %0 : i1 to i32
    %c0_i32_0 = arith.constant 0 : i32
    %2 = arith.cmpi ne, %1, %c0_i32_0 : i32
    scf.if %2 {
      %cst_9 = arith.constant 0.000000e+00 : f32
      %15 = vector.broadcast %cst_9 : f32 to vector<16x128xf32>
      %c0_10 = arith.constant 0 : index
      %c0_11 = arith.constant 0 : index
      %16 = vector.load %arg7[%c0_10, %c0_11] : memref<16x128xf32, #tpu.memory_space<vmem>>, vector<16x128xf32>
      tpu.vector_store %arg7[%c0_10, %c0_11], %15 {strides = array<i32>} : memref<16x128xf32, #tpu.memory_space<vmem>>, vector<16x128xf32>,
    } else {
    }
    %c128_i32 = arith.constant 128 : i32
    %3 = arith.muli %arg1, %c128_i32 : i32
    %4 = tpu.assume_multiple %3, 128 : i32
    %c0 = arith.constant 0 : index
    %5 = arith.index_cast %4 : i32 to index
    %6 = vector.load %arg3[%c0, %5] : memref<16x128xf32, #tpu.memory_space<vmem>>, vector<16x128xf32>
    %c0_1 = arith.constant 0 : index
    %c0_2 = arith.constant 0 : index
    %7 = vector.load %arg7[%c0_1, %c0_2] : memref<16x128xf32, #tpu.memory_space<vmem>>, vector<16x128xf32>
    %c0_3 = arith.constant 0 : index
    %c0_4 = arith.constant 0 : index
    %8 = vector.load %arg4[%c0_3, %c0_4] : memref<128x128xf32, #tpu.memory_space<vmem>>, vector<128x128xf32>
    %cst = arith.constant dense<0.000000e+00> : vector<16x128xf32>
    %9 = tpu.matmul %6, %8, %cst {dimension_numbers = #tpu.dot_dimension_numbers<[1], [0], [0], [1], [0, 0, 1, 1], [], []>} : vector<16x128xf32>, vector<128x128xf32>, vector<16x128xf32> -> vector<16x128xf32>
    %10 = arith.addf %7, %9 : vector<16x128xf32>
    %c0_5 = arith.constant 0 : index
    %c0_6 = arith.constant 0 : index
    %11 = vector.load %arg7[%c0_5, %c0_6] : memref<16x128xf32, #tpu.memory_space<vmem>>, vector<16x128xf32>
    tpu.vector_store %arg7[%c0_5, %c0_6], %10 {strides = array<i32>} : memref<16x128xf32, #tpu.memory_space<vmem>>, vector<16x128xf32>,
    %c0_i32_7 = arith.constant 0 : i32
    %12 = arith.cmpi eq, %arg1, %c0_i32_7 : i32
    %13 = arith.extui %12 : i1 to i32
    %c0_i32_8 = arith.constant 0 : i32
    %14 = arith.cmpi ne, %13, %c0_i32_8 : i32
    scf.if %14 {
      %c0_9 = arith.constant 0 : index
      %15 = memref.load %arg2[%c0_9] : memref<1xf32, #tpu.memory_space<smem>>
      %c0_10 = arith.constant 0 : index
      %c0_11 = arith.constant 0 : index
      %16 = vector.load %arg5[%c0_10, %c0_11] : memref<3x128xf32, #tpu.memory_space<vmem>>, vector<1x128xf32>
      %c1 = arith.constant 1 : index
      %c0_12 = arith.constant 0 : index
      %17 = vector.load %arg5[%c1, %c0_12] : memref<3x128xf32, #tpu.memory_space<vmem>>, vector<1x128xf32>
      %c2 = arith.constant 2 : index
      %c0_13 = arith.constant 0 : index
      %18 = vector.load %arg5[%c2, %c0_13] : memref<3x128xf32, #tpu.memory_space<vmem>>, vector<1x128xf32>
      %c0_14 = arith.constant 0 : index
      %c0_15 = arith.constant 0 : index
      %19 = vector.load %arg3[%c0_14, %c0_15] : memref<16x128xf32, #tpu.memory_space<vmem>>, vector<16x128xf32>
      %c0_16 = arith.constant 0 : index
      %c0_17 = arith.constant 0 : index
      %20 = vector.load %arg7[%c0_16, %c0_17] : memref<16x128xf32, #tpu.memory_space<vmem>>, vector<16x128xf32>
      %21 = vector.broadcast %16 : vector<1x128xf32> to vector<16x128xf32>
      %22 = arith.addf %20, %21 : vector<16x128xf32>
      %23 = vector.broadcast %15 : f32 to vector<16x128xf32>
      %24 = arith.mulf %23, %22 : vector<16x128xf32>
      %25 = arith.addf %19, %24 : vector<16x128xf32>
      %cst_18 = arith.constant dense<0.000000e+00> : vector<16xf32>
      %26 = vector.multi_reduction <add>, %25, %cst_18 [1] : vector<16x128xf32> to vector<16xf32>
      %27 = vector.shape_cast %26 : vector<16xf32> to vector<16x1xf32>
      %cst_19 = arith.constant 1.280000e+02 : f32
      %28 = vector.broadcast %cst_19 : f32 to vector<16x1xf32>
      %29 = arith.divf %27, %28 : vector<16x1xf32>
      %30 = vector.broadcast %29 : vector<16x1xf32> to vector<16x128xf32>
      %31 = arith.subf %25, %30 : vector<16x128xf32>
      %32 = arith.mulf %31, %31 : vector<16x128xf32>
      %cst_20 = arith.constant dense<0.000000e+00> : vector<16xf32>
      %33 = vector.multi_reduction <add>, %32, %cst_20 [1] : vector<16x128xf32> to vector<16xf32>
      %34 = vector.shape_cast %33 : vector<16xf32> to vector<16x1xf32>
      %cst_21 = arith.constant 1.280000e+02 : f32
      %35 = vector.broadcast %cst_21 : f32 to vector<16x1xf32>
      %36 = arith.divf %34, %35 : vector<16x1xf32>
      %cst_22 = arith.constant 9.99999974E-6 : f32
      %37 = vector.broadcast %cst_22 : f32 to vector<16x1xf32>
      %38 = arith.addf %36, %37 : vector<16x1xf32>
      %39 = math.rsqrt %38 : vector<16x1xf32>
      %40 = vector.broadcast %39 : vector<16x1xf32> to vector<16x128xf32>
      %41 = arith.mulf %31, %40 : vector<16x128xf32>
      %42 = vector.broadcast %17 : vector<1x128xf32> to vector<16x128xf32>
      %43 = arith.mulf %41, %42 : vector<16x128xf32>
      %44 = vector.broadcast %18 : vector<1x128xf32> to vector<16x128xf32>
      %45 = arith.addf %43, %44 : vector<16x128xf32>
      %c0_23 = arith.constant 0 : index
      %c0_24 = arith.constant 0 : index
      %46 = vector.load %arg6[%c0_23, %c0_24] : memref<16x128xf32, #tpu.memory_space<vmem>>, vector<16x128xf32>
      tpu.vector_store %arg6[%c0_23, %c0_24], %45 {strides = array<i32>} : memref<16x128xf32, #tpu.memory_space<vmem>>, vector<16x128xf32>,
    } else {
    }
    return
  }
  func.func @transform_0(%arg0: i32, %arg1: i32, %arg2: memref<1xf32, #tpu.memory_space<smem>>) -> (i32, i32) {
    %c0_i32 = arith.constant 0 : i32
    %c0_i32_0 = arith.constant 0 : i32
    return %arg0, %c0_i32 : i32, i32
  }
  func.func @transform_1(%arg0: i32, %arg1: i32, %arg2: memref<1xf32, #tpu.memory_space<smem>>) -> (i32, i32) {
    %c0_i32 = arith.constant 0 : i32
    %c0_i32_0 = arith.constant 0 : i32
    return %arg1, %c0_i32 : i32, i32
  }
  func.func @transform_2(%arg0: i32, %arg1: i32, %arg2: memref<1xf32, #tpu.memory_space<smem>>) -> (i32, i32) {
    %c0_i32 = arith.constant 0 : i32
    %c0_i32_0 = arith.constant 0 : i32
    %c0_i32_1 = arith.constant 0 : i32
    return %c0_i32, %c0_i32_0 : i32, i32
  }
  func.func @transform_3(%arg0: i32, %arg1: i32, %arg2: memref<1xf32, #tpu.memory_space<smem>>) -> (i32, i32) {
    %c0_i32 = arith.constant 0 : i32
    %c0_i32_0 = arith.constant 0 : i32
    return %arg0, %c0_i32 : i32, i32
  }
}

</mosaic_0001>

<llo_original>
// kernel: tpu_custom_call.1
$region0: #{tpu_custom_call.1}
  #allocation0 [shape = 'u32[]', space=smem, size = 0x4, offset = 0x4, fixed_abs, tag = 'smem constant byte address 0x4 - core index']
  #allocation1 [shape = 'u32[144,128]{1,0:T(1,128)}', space=vmem, size = 0x12000, scoped, tag = 'internal scratch']
  #allocation2 [shape = 'f32[16,128]{1,0:T(8,128)}', space=vmem, size = 0x2000, scoped, tag = 'scratch operand']
  #allocation3 [shape = 's32[1]{0}', space=sflag, size = 0x4, scoped, tag = 'scoped memory for tpu_custom_call.1']
  #allocation4 [shape = 'f32[1]{0:T(128)S(6)}', space=smem, size = 0x200, scoped, tag = 'prefetched SMEM operand 0']
  %s0 = inlined_call_operand.<no memory space> [shape: f32[1], index: 0, kind: input, shape index: {}]
  %s1 = inlined_call_operand.hbm [shape: f32[16,128], index: 1, kind: input, shape index: {}]
  %s2 = inlined_call_operand.hbm [shape: f32[128,128], index: 2, kind: input, shape index: {}]
  %s3 = inlined_call_operand.vmem [shape: f32[3,128], index: 3, kind: input, shape index: {}]
  %s4 = inlined_call_operand.hbm [shape: f32[16,128], index: 4, kind: output, shape index: {}]
  %s5 = sld [smem:[#allocation0]]
  $region38: #{tpu_custom_call.1} parent=0
    _
  %s7 = ssub.s32 1, %s5
  %s8 = scalar_select 0, %s7, %s5
  %9 = sst [smem:[#allocation4]] %s0
  $region1: #{tpu_custom_call.1} parent=0
    #allocation5 [shape = 'u8[8192]{0}', space=vmem, size = 0x2000, scoped, tag = 'input window, operand 1, single buffered']
    #allocation6 [shape = 's32[1]{0}', space=sflag, size = 0x4, scoped, tag = 'scoped memory for tpu_custom_call.1']
    #allocation7 [shape = 's32[1]{0}', space=sflag, size = 0x4, scoped, tag = 'scoped memory for tpu_custom_call.1']
    #allocation8 [shape = 'u8[65536]{0}', space=vmem, size = 0x10000, scoped, tag = 'input window, operand 2, single buffered']
    #allocation9 [shape = 's32[1]{0}', space=sflag, size = 0x4, scoped, tag = 'scoped memory for tpu_custom_call.1']
    #allocation10 [shape = 'u8[8192]{0}', space=vmem, size = 0x2000, scoped, tag = 'output window, operand 0, single buffered']
    %10 = vsyncpa [#allocation6], 0
    %11 = vsyncpa [#allocation9], 0
    %12 = vsyncpa [#allocation7], 0
    // Predicated region
    $region2: #{tpu_custom_call.1} parent=1 // pred_check
      _
    $region3: #{tpu_custom_call.1} parent=1 // pred_check_branch
      %14 = sbr.rel (0) target = $region5
    $region4: #{tpu_custom_call.1} parent=1 // pred_region
      %s16 = ssub.s32 256, 256
      %17 = vsyncadd [#allocation6], %s16
      %s18 = sshll.u32 [#allocation5], 4
      %s19 = int_to_ptr.vmem [resolvable:$true] %s18
      %24 = dma.hbm_to_vmem [thread:$0]  %s1, 256, %s19, [#allocation6], 128, 128, 8
    $region5: #{tpu_custom_call.1} parent=1 // pred_fallthru
      _
    // Predicated region
    $region6: #{tpu_custom_call.1} parent=1 // pred_check
      _
    $region7: #{tpu_custom_call.1} parent=1 // pred_check_branch
      %26 = sbr.rel (0) target = $region9
    $region8: #{tpu_custom_call.1} parent=1 // pred_region
      %s28 = ssub.s32 2048, 2048
      %29 = vsyncadd [#allocation9], %s28
      %s30 = sshll.u32 [#allocation8], 4
      %s31 = int_to_ptr.vmem [resolvable:$true] %s30
      %36 = dma.hbm_to_vmem [thread:$0]  %s2, 2048, %s31, [#allocation9], 128, 128, 8
    $region9: #{tpu_custom_call.1} parent=1 // pred_fallthru
      _
    // Predicated region
    $region10: #{tpu_custom_call.1} parent=1 // pred_check
      _
    $region11: #{tpu_custom_call.1} parent=1 // pred_check_branch
      %38 = sbr.rel (0) target = $region13
    $region12: #{tpu_custom_call.1} parent=1 // pred_region
      _
    $region13: #{tpu_custom_call.1} parent=1 // pred_fallthru
      _
    // Predicated region
    $region14: #{tpu_custom_call.1} parent=1 // pred_check
      _
    $region15: #{tpu_custom_call.1} parent=1 // pred_check_branch
      %40 = sbr.rel (0) target = $region17
    $region16: #{tpu_custom_call.1} parent=1 // pred_region
      %41 = dma.done [#allocation6], 256
    $region17: #{tpu_custom_call.1} parent=1 // pred_fallthru
      _
    // Predicated region
    $region18: #{tpu_custom_call.1} parent=1 // pred_check
      _
    $region19: #{tpu_custom_call.1} parent=1 // pred_check_branch
      %43 = sbr.rel (0) target = $region21
    $region20: #{tpu_custom_call.1} parent=1 // pred_region
      %44 = dma.done [#allocation9], 2048
    $region21: #{tpu_custom_call.1} parent=1 // pred_fallthru
      _
    %p45 = scmp.eq.s32.totalorder 0, 0
    // Predicated region
    $region22: #{tpu_custom_call.1} parent=1 // pred_check
      %p46 = pneg %p45
    $region23: #{tpu_custom_call.1} parent=1 // pred_check_branch
      %48 = sbr.rel (%p46) target = $region25
    $region24: #{tpu_custom_call.1} parent=1 // pred_region
      %49 = vst [vmem:[#allocation2] sm:$0xff] 0.0
      %50 = vst [vmem:[#allocation2 + $0x8] sm:$0xff] 0.0
    $region25: #{tpu_custom_call.1} parent=1 // pred_fallthru
      _
    %s51 = smul.u32 0, 128
    %s52 = sshra.s32 %s51, 7
    %s53 = sand.u32 %s51, 127
    %s54 = scalar_lea.vmem [#allocation5], %s52
    %v55 = vld [vmem:[%s54] sm:$0xff]
    %v56 = vld [vmem:[%s54 + $0x8] sm:$0xff]
    %v57 = vld [vmem:[#allocation2] sm:$0xff]
    %v58 = vld [vmem:[#allocation2 + $0x8] sm:$0xff]
    %v59 = vld [vmem:[#allocation8] sm:$0xff]
    %v60 = vld [vmem:[#allocation8 + $0x8] sm:$0xff]
    %v61 = vld [vmem:[#allocation8 + $0x10] sm:$0xff]
    %v62 = vld [vmem:[#allocation8 + $0x18] sm:$0xff]
    %v63 = vld [vmem:[#allocation8 + $0x20] sm:$0xff]
    %v64 = vld [vmem:[#allocation8 + $0x28] sm:$0xff]
    %v65 = vld [vmem:[#allocation8 + $0x30] sm:$0xff]
    %v66 = vld [vmem:[#allocation8 + $0x38] sm:$0xff]
    %v67 = vld [vmem:[#allocation8 + $0x40] sm:$0xff]
    %v68 = vld [vmem:[#allocation8 + $0x48] sm:$0xff]
    %v69 = vld [vmem:[#allocation8 + $0x50] sm:$0xff]
    %v70 = vld [vmem:[#allocation8 + $0x58] sm:$0xff]
    %v71 = vld [vmem:[#allocation8 + $0x60] sm:$0xff]
    %v72 = vld [vmem:[#allocation8 + $0x68] sm:$0xff]
    %v73 = vld [vmem:[#allocation8 + $0x70] sm:$0xff]
    %v74 = vld [vmem:[#allocation8 + $0x78] sm:$0xff]
    %75 = vmatprep.subr.mxu0 0.0
    %76 = vmatpush1.msra.mxu0 %v74
    %77 = vmatprep.subr.mxu0 0.0
    %78 = vmatpush1.msra.mxu0 %v73
    %79 = vmatprep.subr.mxu0 0.0
    %80 = vmatpush1.msra.mxu0 %v72
    %81 = vmatprep.subr.mxu0 0.0
    %82 = vmatpush1.msra.mxu0 %v71
    %83 = vmatprep.subr.mxu0 0.0
    %84 = vmatpush1.msra.mxu0 %v70
    %85 = vmatprep.subr.mxu0 0.0
    %86 = vmatpush1.msra.mxu0 %v69
    %87 = vmatprep.subr.mxu0 0.0
    %88 = vmatpush1.msra.mxu0 %v68
    %89 = vmatprep.subr.mxu0 0.0
    %90 = vmatpush1.msra.mxu0 %v67
    %91 = vmatprep.subr.mxu0 0.0
    %92 = vmatpush1.msra.mxu0 %v66
    %93 = vmatprep.subr.mxu0 0.0
    %94 = vmatpush1.msra.mxu0 %v65
    %95 = vmatprep.subr.mxu0 0.0
    %96 = vmatpush1.msra.mxu0 %v64
    %97 = vmatprep.subr.mxu0 0.0
    %98 = vmatpush1.msra.mxu0 %v63
    %99 = vmatprep.subr.mxu0 0.0
    %100 = vmatpush1.msra.mxu0 %v62
    %101 = vmatprep.subr.mxu0 0.0
    %102 = vmatpush1.msra.mxu0 %v61
    %103 = vmatprep.subr.mxu0 0.0
    %104 = vmatpush1.msra.mxu0 %v60
    %105 = vmatprep.subr.mxu0 0.0
    %106 = vmatpush1.msra.mxu0 %v59
    %107 = vmatprep.subr.mxu0 0.0
    %108 = vmatpush2.msra.mxu0 0.0
    %109 = vmatprep.subr.mxu0 0.0
    %110 = vmatpush2.msra.mxu0 0.0
    %111 = vmatprep.subr.mxu0 0.0
    %112 = vmatpush2.msra.mxu0 0.0
    %113 = vmatprep.subr.mxu0 0.0
    %114 = vmatpush2.msra.mxu0 0.0
    %115 = vmatprep.subr.mxu0 0.0
    %116 = vmatpush2.msra.mxu0 0.0
    %117 = vmatprep.subr.mxu0 0.0
    %118 = vmatpush2.msra.mxu0 0.0
    %119 = vmatprep.subr.mxu0 0.0
    %120 = vmatpush2.msra.mxu0 0.0
    %121 = vmatprep.subr.mxu0 0.0
    %122 = vmatpush2.msra.mxu0 0.0
    %123 = vmatprep.subr.mxu0 0.0
    %124 = vmatpush2.msra.mxu0 0.0
    %125 = vmatprep.subr.mxu0 0.0
    %126 = vmatpush2.msra.mxu0 0.0
    %127 = vmatprep.subr.mxu0 0.0
    %128 = vmatpush2.msra.mxu0 0.0
    %129 = vmatprep.subr.mxu0 0.0
    %130 = vmatpush2.msra.mxu0 0.0
    %131 = vmatprep.subr.mxu0 0.0
    %132 = vmatpush2.msra.mxu0 0.0
    %133 = vmatprep.subr.mxu0 0.0
    %134 = vmatpush2.msra.mxu0 0.0
    %135 = vmatprep.subr.mxu0 0.0
    %136 = vmatpush2.msra.mxu0 0.0
    %137 = vmatprep.subr.mxu0 0.0
    %138 = vmatpush2.msra.mxu0 0.0
    %139 = vmatprep.mubr.f32.mxu0 0.0
    %140 = vmatmul.mubr.f32.gmra.mxu0 %v55
    %v141 = vpop.f32.mrf.mxu0
    %v142 = vadd.f32 0.0, %v141
    %v143 = vpop.f32.mrf.mxu0
    %144 = vmatprep.mubr.f32.mxu0 0.0
    %145 = vmatmul.mubr.f32.gmra.mxu0 %v56
    %v146 = vpop.f32.mrf.mxu0
    %v147 = vadd.f32 0.0, %v146
    %v148 = vpop.f32.mrf.mxu0
    %149 = vdwg.mxu0
    %v150 = vadd.f32 %v57, %v142
    %v151 = vadd.f32 %v58, %v147
    %152 = vst [vmem:[#allocation2] sm:$0xff] %v150
    %153 = vst [vmem:[#allocation2 + $0x8] sm:$0xff] %v151
    // Predicated region
    $region26: #{tpu_custom_call.1} parent=1 // pred_check
      %p154 = pneg %p45
    $region27: #{tpu_custom_call.1} parent=1 // pred_check_branch
      %156 = sbr.rel (%p154) target = $region29
    $region28: #{tpu_custom_call.1} parent=1 // pred_region
      %s157 = sld [smem:[#allocation4]]
      %v158 = vld [vmem:[%s3] sm:$0x1]
      %v159 = vld [vmem:[%s3 + $0x1] sm:$0x1]
      %v160 = vld [vmem:[%s3 + $0x2] sm:$0x1]
      %v161 = vld [vmem:[#allocation5] sm:$0xff]
      %v162 = vld [vmem:[#allocation5 + $0x8] sm:$0xff]
      %v163 = vld [vmem:[#allocation2] sm:$0xff]
      %v164 = vld [vmem:[#allocation2 + $0x8] sm:$0xff]
      %v165 = vlaneseq
      %v166 = vshrl.u32 %v165, 7
      %v167 = vsub.s32 0, %v166
      %v168 = vrot.slane %v158, %v167
      %v169 = vadd.f32 %v163, %v168
      %v170 = vadd.f32 %v164, %v168
      %v171 = vstv %s157
      %v172 = vmul.f32 %v171, %v169
      %v173 = vmul.f32 %v171, %v170
      %v174 = vadd.f32 %v161, %v172
      %v175 = vadd.f32 %v162, %v173
      %176 = vadd.xlane.f32.xlu0 %v174
      %v177 = vpop.xlane.xlu0 %176
      %178 = vadd.xlane.f32.xlu0 %v175
      %v179 = vpop.xlane.xlu0 %178
      %v180 = vrcp.pop 128.0
      %v181 = vmul.f32 %v177, %v180
      %v182 = vmul.f32 %v179, %v180
      %v183 = vsub.f32 %v174, %v181
      %v184 = vsub.f32 %v175, %v182
      %v185 = vmul.f32 %v183, %v183
      %v186 = vmul.f32 %v184, %v184
      %187 = vadd.xlane.f32.xlu0 %v185
      %v188 = vpop.xlane.xlu0 %187
      %189 = vadd.xlane.f32.xlu0 %v186
      %v190 = vpop.xlane.xlu0 %189
      %v191 = vmul.f32 %v188, %v180
      %v192 = vmul.f32 %v190, %v180
      %v193 = vadd.f32 %v191, 1e-05
      %v194 = vadd.f32 %v192, 1e-05
      %v195 = vrsqrt.pop %v193
      %v196 = vrsqrt.pop %v194
      %v197 = vmul.f32 %v183, %v195
      %v198 = vmul.f32 %v184, %v196
      %v199 = vlaneseq
      %v200 = vshrl.u32 %v199, 7
      %v201 = vsub.s32 0, %v200
      %v202 = vrot.slane %v159, %v201
      %v203 = vmul.f32 %v197, %v202
      %v204 = vmul.f32 %v198, %v202
      %v205 = vlaneseq
      %v206 = vshrl.u32 %v205, 7
      %v207 = vsub.s32 0, %v206
      %v208 = vrot.slane %v160, %v207
      %v209 = vadd.f32 %v203, %v208
      %v210 = vadd.f32 %v204, %v208
      %211 = vst [vmem:[#allocation10] sm:$0xff] %v209
      %212 = vst [vmem:[#allocation10 + $0x8] sm:$0xff] %v210
    $region29: #{tpu_custom_call.1} parent=1 // pred_fallthru
      _
    // Predicated region
    $region30: #{tpu_custom_call.1} parent=1 // pred_check
      _
    $region31: #{tpu_custom_call.1} parent=1 // pred_check_branch
      %214 = sbr.rel (0) target = $region33
    $region32: #{tpu_custom_call.1} parent=1 // pred_region
      %s216 = ssub.s32 256, 256
      %217 = vsyncadd [#allocation7], %s216
      %s218 = sshll.u32 [#allocation10], 4
      %s219 = int_to_ptr.vmem [resolvable:$true] %s218
      %224 = dma.vmem_to_hbm [thread:$0]  %s219, 256, %s4, [#allocation7], 128, 128, 8
    $region33: #{tpu_custom_call.1} parent=1 // pred_fallthru
      _
    // Predicated region
    $region34: #{tpu_custom_call.1} parent=1 // pred_check
      _
    $region35: #{tpu_custom_call.1} parent=1 // pred_check_branch
      %226 = sbr.rel (0) target = $region37
    $region36: #{tpu_custom_call.1} parent=1 // pred_region
      %227 = dma.done [#allocation7], 256
    $region37: #{tpu_custom_call.1} parent=1 // pred_fallthru
      _
    %228 = vsyncpa [#allocation6], 1
    %229 = vsyncpa [#allocation9], 1
    %230 = vsyncpa [#allocation7], 1

</llo_original>
